<compile_context>
chip_gen: v7x
topology: tpu7x:2x2x1
jax: 0.10.0
libtpu: 0.0.40
codegen_flags: <defaults>
</compile_context>

<pallas_src>
import functools

import jax
import jax.numpy as jnp
from jax.experimental import pallas as pl
from jax.experimental.pallas import tpu as pltpu
from jax.scipy.linalg import block_diag


def _swish(v):
    return v * jax.nn.sigmoid(v)


# ----------------------------- kernel body ---------------------------------
def _ensemble_kernel(x_ref,
                     w1_ref, b1_ref, w2_ref, b2_ref, w3_ref, b3_ref,
                     w4_ref, b4_ref, w5_ref, b5_ref,
                     max_lv_ref, min_lv_ref,
                     out_ref, *, eout):
    """One row tile of the lane-fused ensemble MLP.

    x_ref : (E, TM, in_dim)  bf16  -- same TM rows for every ensemble member
    w1_ref: (E, in_dim, E*H) bf16  -- member e's weight lives in lanes [e*H,(e+1)*H)
    w2..w4: (E*H, E*H)       bf16  -- block-diagonal ensemble fusion
    w5    : (E*H, OUTW)      bf16  -- [mean head | logvar head | zero pad]
    out   : (TM, OUTW)       f32   -- lanes [0,eout)=mean, [eout,2*eout)=var, rest 0
    """
    E = x_ref.shape[0]
    eh = w2_ref.shape[0]

    # ---- layer 1: per-member matmuls summed into the fused (TM, E*H) act ----
    acc = jnp.dot(x_ref[0], w1_ref[0], preferred_element_type=jnp.float32)
    for e in range(1, E):                                   # static unroll, E small
        acc = acc + jnp.dot(x_ref[e], w1_ref[e],
                            preferred_element_type=jnp.float32)
    h = _swish(acc + b1_ref[...])

    # ---- layers 2..4: block-diagonal, 128-lane dense -------------------------
    def fc(v, w_ref, b_ref):
        return (jnp.dot(v.astype(w_ref.dtype), w_ref[...],
                        preferred_element_type=jnp.float32) + b_ref[...])

    h = _swish(fc(h, w2_ref, b2_ref))
    h = _swish(fc(h, w3_ref, b3_ref))
    h = _swish(fc(h, w4_ref, b4_ref))

    # ---- layer 5: combined mean/logvar head, one lane-dense output slab ------
    raw = fc(h, w5_ref, b5_ref)                             # (TM, OUTW) f32

    max_lv = max_lv_ref[...]                                # (1, OUTW), var lanes only
    min_lv = min_lv_ref[...]
    logvar = max_lv - jax.nn.softplus(max_lv - raw)
    logvar = min_lv + jax.nn.softplus(logvar - min_lv)
    var = jnp.exp(logvar)                                   # ret_log_var=False path

    lane = jax.lax.broadcasted_iota(jnp.int32, raw.shape, 1)
    is_var = (lane >= eout) & (lane < 2 * eout)
    out_ref[...] = jnp.where(is_var, var, raw)              # mean / var / 0-pad


# ------------------------------- wrapper ------------------------------------
def _round_up(v, m):
    return ((v + m - 1) // m) * m


@functools.partial(jax.jit, static_argnames=("output_dim", "block_rows"))
def ensemble_model_forward(x, params, max_logvar, min_logvar, *, output_dim,
                           block_rows=2048):
    """x: (E, N, in_dim) f32.  Returns (mean, var), each (E, N, output_dim) f32."""
    E, N, in_dim = x.shape
    H = params["w2"].shape[1]
    EH = E * H
    Eout = E * output_dim
    OUTW = _round_up(2 * Eout, 128)          # lane-dense padded output width
    f32, bf16 = jnp.float32, jnp.bfloat16

    # ---- pack weights (block-diagonal ensemble fusion), cast MXU operands ----
    # TODO(synk): for production, pack/cast the weights once outside the step fn.
    bd = lambda w: block_diag(*[w[e] for e in range(E)])

    # layer 1: per-member weight widened to E*H lanes.
    w1_wide = jnp.zeros((E, in_dim, EH), f32)
    for e in range(E):
        w1_wide = w1_wide.at[e, :, e * H:(e + 1) * H].set(params["w1"][e])

    w2 = bd(params["w2"]); w3 = bd(params["w3"]); w4 = bd(params["w4"])

    w5 = params["w5"]                                        # (E, H, 2*out)
    w5c = jnp.concatenate([bd(w5[:, :, :output_dim]),        # mean head  (EH, Eout)
                           bd(w5[:, :, output_dim:])], 1)    # logvar head (EH, Eout)
    w5c = jnp.pad(w5c, ((0, 0), (0, OUTW - 2 * Eout)))       # zero cols -> 128 lanes

    vec = lambda b: b.reshape(1, -1)
    b1 = vec(params["b1"]); b2 = vec(params["b2"])
    b3 = vec(params["b3"]); b4 = vec(params["b4"])
    b5c = jnp.concatenate([vec(params["b5"][:, :output_dim]),
                           vec(params["b5"][:, output_dim:])], 1)
    b5c = jnp.pad(b5c, ((0, 0), (0, OUTW - 2 * Eout)))

    zeros_m = jnp.zeros((1, Eout), f32)
    zeros_p = jnp.zeros((1, OUTW - 2 * Eout), f32)
    max_row = jnp.concatenate([zeros_m, jnp.tile(max_logvar, (1, E)), zeros_p], 1)
    min_row = jnp.concatenate([zeros_m, jnp.tile(min_logvar, (1, E)), zeros_p], 1)

    w1_wide = w1_wide.astype(bf16)
    w2 = w2.astype(bf16); w3 = w3.astype(bf16); w4 = w4.astype(bf16)
    w5c = w5c.astype(bf16)

    # ---- row tiling (weights stay VMEM-resident; x/out stream) ---------------
    tm_cap = _round_up(max(8, -(-N // 2)), 8)   # keep >= 2 grid steps when possible
    tm = max(8, min(block_rows, tm_cap, _round_up(N, 8)))
    grid_n = pl.cdiv(N, tm)
    N_pad = grid_n * tm
    if N_pad != N:
        x = jnp.pad(x, ((0, 0), (0, N_pad - N), (0, 0)))     # zero rows: harmless
    x = x.astype(bf16)                                       # halve input HBM traffic

    resident = lambda r, c: pl.BlockSpec((r, c), lambda i: (0, 0))
    in_specs = [
        pl.BlockSpec((E, tm, in_dim), lambda i: (0, i, 0)),  # x tile (streams)
        pl.BlockSpec((E, in_dim, EH), lambda i: (0, 0, 0)),  # nn1 (resident)
        resident(1, EH),
        resident(EH, EH), resident(1, EH),                   # nn2
        resident(EH, EH), resident(1, EH),                   # nn3
        resident(EH, EH), resident(1, EH),                   # nn4
        resident(EH, OUTW), resident(1, OUTW),               # nn5 combined head
        resident(1, OUTW), resident(1, OUTW),                # max / min logvar rows
    ]
    out_specs = pl.BlockSpec((tm, OUTW), lambda i: (i, 0))
    out_shape = jax.ShapeDtypeStruct((N_pad, OUTW), f32)

    weight_bytes = 2 * (E * in_dim * EH + 3 * EH * EH + EH * OUTW) \
        + 4 * (4 * EH + 3 * OUTW)
    cost = pl.CostEstimate(
        flops=2 * N_pad * (E * in_dim * EH + 3 * EH * EH + EH * OUTW),
        transcendentals=N_pad * (8 * EH + 5 * OUTW),  # 4 sigmoid, 2 softplus, 1 exp
        bytes_accessed=2 * E * N_pad * in_dim + weight_bytes + 4 * N_pad * OUTW,
    )

    out = pl.pallas_call(
        functools.partial(_ensemble_kernel, eout=Eout),
        out_shape=out_shape,
        grid_spec=pltpu.PrefetchScalarGridSpec(
            num_scalar_prefetch=0,
            grid=(grid_n,),
            in_specs=in_specs,
            out_specs=out_specs,
        ),
        compiler_params=pltpu.CompilerParams(
            dimension_semantics=("parallel",),
            vmem_limit_bytes=48 * 1024 * 1024,   # under v7x 64 MiB physical VMEM
        ),
        cost_estimate=cost,
    )(x, w1_wide, b1, w2, b2, w3, b3, w4, b4, w5c, b5c, max_row, min_row)

    # ---- unpack: drop the lane/row padding FIRST, then split mean / var ------
    out = out[:N, :2 * Eout]
    mean = jnp.transpose(out[:, :Eout].reshape(N, E, output_dim), (1, 0, 2))
    var = jnp.transpose(out[:, Eout:].reshape(N, E, output_dim), (1, 0, 2))
    return mean, var


# ------------------------- parameter initialization --------------------------
def init_ensemble_params(key, in_dim, hidden, out2, ensemble_size):
    """Truncated-normal weights (std = 1/(2*sqrt(fan_in)), clipped at 2 std),
    zero biases — mirroring init_weights() in the PyTorch module."""
    def trunc(k, shape, fan_in):
        std = 1.0 / (2.0 * jnp.sqrt(jnp.float32(fan_in)))
        return jax.random.truncated_normal(k, -2.0, 2.0, shape, jnp.float32) * std

    ks = jax.random.split(key, 5)
    dims = [(in_dim, hidden), (hidden, hidden), (hidden, hidden),
            (hidden, hidden), (hidden, out2)]
    params = {}
    for i, (k, (di, do)) in enumerate(zip(ks, dims), start=1):
        params[f"w{i}"] = trunc(k, (ensemble_size, di, do), di)
        params[f"b{i}"] = jnp.zeros((ensemble_size, do), jnp.float32)
    return params


# ----------------------------- reference (JAX) -------------------------------
def reference_forward(x, params, max_lv, min_lv, output_dim):
    """Pure-JAX reference using the same bf16-operand / f32-accumulate matmul
    numerics as the kernel (elementwise math in f32)."""
    bf16 = jnp.bfloat16

    def fc(h, w, b):
        return (jnp.einsum("eni,eio->eno", h.astype(bf16), w.astype(bf16),
                           preferred_element_type=jnp.float32)
                + b[:, None, :].astype(jnp.float32))

    swish = lambda v: v * jax.nn.sigmoid(v)
    h = swish(fc(x, params["w1"], params["b1"]))
    h = swish(fc(h, params["w2"], params["b2"]))
    h = swish(fc(h, params["w3"], params["b3"]))
    h = swish(fc(h, params["w4"], params["b4"]))
    out = fc(h, params["w5"], params["b5"])
    mean = out[:, :, :output_dim]
    logvar = max_lv - jax.nn.softplus(max_lv - out[:, :, output_dim:])
    logvar = min_lv + jax.nn.softplus(logvar - min_lv)
    return mean, jnp.exp(logvar)


# --------------------------------- main --------------------------------------
if __name__ == "__main__":
    # Small shapes consistent with the module's constructor.
    state_size, action_size, reward_size, terminal_size = 5, 3, 1, 0
    ensemble_size = 4
    hidden_size = 32           # E*H = 128 lanes: one full vreg lane span
    batch = 8

    in_dim = state_size + action_size                       # 8
    output_dim = state_size + reward_size + terminal_size   # 6

    key = jax.random.PRNGKey(0)
    k_params, k_bias, k_x = jax.random.split(key, 3)

    params = init_ensemble_params(k_params, in_dim, hidden_size,
                                  2 * output_dim, ensemble_size)
    # The module initializes biases to zero; perturb them here so the test
    # exercises the packed-bias path of the kernel.
    for i, bk in enumerate(jax.random.split(k_bias, 5), start=1):
        params[f"b{i}"] = 0.1 * jax.random.normal(
            bk, params[f"b{i}"].shape, jnp.float32)

    max_logvar = jnp.ones((1, output_dim), jnp.float32) / 2.0
    min_logvar = -jnp.ones((1, output_dim), jnp.float32) * 10.0

    x = jax.random.normal(k_x, (ensemble_size, batch, in_dim), jnp.float32)

    mean, var = ensemble_model_forward(x, params, max_logvar, min_logvar,
                                       output_dim=output_dim)
    mean, var = jax.block_until_ready((mean, var))

    mean_ref, var_ref = reference_forward(x, params, max_logvar, min_logvar,
                                          output_dim)
    assert mean.shape == (ensemble_size, batch, output_dim)
    assert var.shape == (ensemble_size, batch, output_dim)
    # Tolerance accounts for bf16-operand matmuls + Mosaic-vs-XLA transcendentals.
    assert jnp.allclose(mean, mean_ref, atol=5e-3, rtol=5e-3), \
        float(jnp.max(jnp.abs(mean - mean_ref)))
    assert jnp.allclose(var, var_ref, atol=5e-3, rtol=5e-3), \
        float(jnp.max(jnp.abs(var - var_ref)))

    print("KERNEL_OK")
</pallas_src>

<mosaic_0001>
module attributes {stable_mosaic.version = 11 : i64} {
  func.func @_ensemble_kernel(%arg0: i32, %arg1: memref<4x8x8xbf16, #tpu.memory_space<vmem>>, %arg2: memref<4x8x128xbf16, #tpu.memory_space<vmem>>, %arg3: memref<1x128xf32, #tpu.memory_space<vmem>>, %arg4: memref<128x128xbf16, #tpu.memory_space<vmem>>, %arg5: memref<1x128xf32, #tpu.memory_space<vmem>>, %arg6: memref<128x128xbf16, #tpu.memory_space<vmem>>, %arg7: memref<1x128xf32, #tpu.memory_space<vmem>>, %arg8: memref<128x128xbf16, #tpu.memory_space<vmem>>, %arg9: memref<1x128xf32, #tpu.memory_space<vmem>>, %arg10: memref<128x128xbf16, #tpu.memory_space<vmem>>, %arg11: memref<1x128xf32, #tpu.memory_space<vmem>>, %arg12: memref<1x128xf32, #tpu.memory_space<vmem>>, %arg13: memref<1x128xf32, #tpu.memory_space<vmem>>, %arg14: memref<8x128xf32, #tpu.memory_space<vmem>>) attributes {dimension_semantics = [#tpu.dimension_semantics<parallel>], iteration_bounds = array<i64: 1>, scalar_prefetch = 0 : i64, scratch_operands = 0 : i64, tpu.core_type = #tpu.core_type<tc>, window_params = [{transform_indices = @transform_0, window_bounds = array<i64: 4, 8, 8>}, {pipeline_mode = #tpu.pipeline_mode<synchronous>, transform_indices = @transform_1, window_bounds = array<i64: 4, 8, 128>}, {pipeline_mode = #tpu.pipeline_mode<synchronous>, transform_indices = @transform_2, window_bounds = array<i64: 1, 128>}, {pipeline_mode = #tpu.pipeline_mode<synchronous>, transform_indices = @transform_3, window_bounds = array<i64: 128, 128>}, {pipeline_mode = #tpu.pipeline_mode<synchronous>, transform_indices = @transform_4, window_bounds = array<i64: 1, 128>}, {pipeline_mode = #tpu.pipeline_mode<synchronous>, transform_indices = @transform_5, window_bounds = array<i64: 128, 128>}, {pipeline_mode = #tpu.pipeline_mode<synchronous>, transform_indices = @transform_6, window_bounds = array<i64: 1, 128>}, {pipeline_mode = #tpu.pipeline_mode<synchronous>, transform_indices = @transform_7, window_bounds = array<i64: 128, 128>}, {pipeline_mode = #tpu.pipeline_mode<synchronous>, transform_indices = @transform_8, window_bounds = array<i64: 1, 128>}, {pipeline_mode = #tpu.pipeline_mode<synchronous>, transform_indices = @transform_9, window_bounds = array<i64: 128, 128>}, {pipeline_mode = #tpu.pipeline_mode<synchronous>, transform_indices = @transform_10, window_bounds = array<i64: 1, 128>}, {pipeline_mode = #tpu.pipeline_mode<synchronous>, transform_indices = @transform_11, window_bounds = array<i64: 1, 128>}, {pipeline_mode = #tpu.pipeline_mode<synchronous>, transform_indices = @transform_12, window_bounds = array<i64: 1, 128>}, {transform_indices = @transform_13, window_bounds = array<i64: 8, 128>}]} {
    %c0 = arith.constant 0 : index
    %c0_0 = arith.constant 0 : index
    %c0_1 = arith.constant 0 : index
    %0 = vector.load %arg1[%c0, %c0_0, %c0_1] : memref<4x8x8xbf16, #tpu.memory_space<vmem>>, vector<1x8x8xbf16>
    %1 = vector.shape_cast %0 : vector<1x8x8xbf16> to vector<8x8xbf16>
    %c0_2 = arith.constant 0 : index
    %c0_3 = arith.constant 0 : index
    %c0_4 = arith.constant 0 : index
    %2 = vector.load %arg2[%c0_2, %c0_3, %c0_4] : memref<4x8x128xbf16, #tpu.memory_space<vmem>>, vector<1x8x128xbf16>
    %3 = vector.shape_cast %2 : vector<1x8x128xbf16> to vector<8x128xbf16>
    %cst = arith.constant dense<0.000000e+00> : vector<8x128xf32>
    %4 = tpu.matmul %1, %3, %cst {dimension_numbers = #tpu.dot_dimension_numbers<[1], [0], [0], [1], [0, 0, 1, 1], [], []>} : vector<8x8xbf16>, vector<8x128xbf16>, vector<8x128xf32> -> vector<8x128xf32>
    %c1 = arith.constant 1 : index
    %c0_5 = arith.constant 0 : index
    %c0_6 = arith.constant 0 : index
    %5 = vector.load %arg1[%c1, %c0_5, %c0_6] : memref<4x8x8xbf16, #tpu.memory_space<vmem>>, vector<1x8x8xbf16>
    %6 = vector.shape_cast %5 : vector<1x8x8xbf16> to vector<8x8xbf16>
    %c1_7 = arith.constant 1 : index
    %c0_8 = arith.constant 0 : index
    %c0_9 = arith.constant 0 : index
    %7 = vector.load %arg2[%c1_7, %c0_8, %c0_9] : memref<4x8x128xbf16, #tpu.memory_space<vmem>>, vector<1x8x128xbf16>
    %8 = vector.shape_cast %7 : vector<1x8x128xbf16> to vector<8x128xbf16>
    %cst_10 = arith.constant dense<0.000000e+00> : vector<8x128xf32>
    %9 = tpu.matmul %6, %8, %cst_10 {dimension_numbers = #tpu.dot_dimension_numbers<[1], [0], [0], [1], [0, 0, 1, 1], [], []>} : vector<8x8xbf16>, vector<8x128xbf16>, vector<8x128xf32> -> vector<8x128xf32>
    %10 = arith.addf %4, %9 : vector<8x128xf32>
    %c2 = arith.constant 2 : index
    %c0_11 = arith.constant 0 : index
    %c0_12 = arith.constant 0 : index
    %11 = vector.load %arg1[%c2, %c0_11, %c0_12] : memref<4x8x8xbf16, #tpu.memory_space<vmem>>, vector<1x8x8xbf16>
    %12 = vector.shape_cast %11 : vector<1x8x8xbf16> to vector<8x8xbf16>
    %c2_13 = arith.constant 2 : index
    %c0_14 = arith.constant 0 : index
    %c0_15 = arith.constant 0 : index
    %13 = vector.load %arg2[%c2_13, %c0_14, %c0_15] : memref<4x8x128xbf16, #tpu.memory_space<vmem>>, vector<1x8x128xbf16>
    %14 = vector.shape_cast %13 : vector<1x8x128xbf16> to vector<8x128xbf16>
    %cst_16 = arith.constant dense<0.000000e+00> : vector<8x128xf32>
    %15 = tpu.matmul %12, %14, %cst_16 {dimension_numbers = #tpu.dot_dimension_numbers<[1], [0], [0], [1], [0, 0, 1, 1], [], []>} : vector<8x8xbf16>, vector<8x128xbf16>, vector<8x128xf32> -> vector<8x128xf32>
    %16 = arith.addf %10, %15 : vector<8x128xf32>
    %c3 = arith.constant 3 : index
    %c0_17 = arith.constant 0 : index
    %c0_18 = arith.constant 0 : index
    %17 = vector.load %arg1[%c3, %c0_17, %c0_18] : memref<4x8x8xbf16, #tpu.memory_space<vmem>>, vector<1x8x8xbf16>
    %18 = vector.shape_cast %17 : vector<1x8x8xbf16> to vector<8x8xbf16>
    %c3_19 = arith.constant 3 : index
    %c0_20 = arith.constant 0 : index
    %c0_21 = arith.constant 0 : index
    %19 = vector.load %arg2[%c3_19, %c0_20, %c0_21] : memref<4x8x128xbf16, #tpu.memory_space<vmem>>, vector<1x8x128xbf16>
    %20 = vector.shape_cast %19 : vector<1x8x128xbf16> to vector<8x128xbf16>
    %cst_22 = arith.constant dense<0.000000e+00> : vector<8x128xf32>
    %21 = tpu.matmul %18, %20, %cst_22 {dimension_numbers = #tpu.dot_dimension_numbers<[1], [0], [0], [1], [0, 0, 1, 1], [], []>} : vector<8x8xbf16>, vector<8x128xbf16>, vector<8x128xf32> -> vector<8x128xf32>
    %22 = arith.addf %16, %21 : vector<8x128xf32>
    %c0_23 = arith.constant 0 : index
    %c0_24 = arith.constant 0 : index
    %23 = vector.load %arg3[%c0_23, %c0_24] : memref<1x128xf32, #tpu.memory_space<vmem>>, vector<1x128xf32>
    %24 = vector.broadcast %23 : vector<1x128xf32> to vector<8x128xf32>
    %25 = arith.addf %22, %24 : vector<8x128xf32>
    %26 = arith.negf %25 : vector<8x128xf32>
    %27 = math.exp %26 : vector<8x128xf32>
    %cst_25 = arith.constant 1.000000e+00 : f32
    %28 = vector.broadcast %cst_25 : f32 to vector<8x128xf32>
    %29 = arith.addf %28, %27 : vector<8x128xf32>
    %30 = arith.divf %28, %29 : vector<8x128xf32>
    %31 = arith.mulf %25, %30 : vector<8x128xf32>
    %32 = arith.truncf %31 : vector<8x128xf32> to vector<8x128xbf16>
    %c0_26 = arith.constant 0 : index
    %c0_27 = arith.constant 0 : index
    %33 = vector.load %arg4[%c0_26, %c0_27] : memref<128x128xbf16, #tpu.memory_space<vmem>>, vector<128x128xbf16>
    %cst_28 = arith.constant dense<0.000000e+00> : vector<8x128xf32>
    %34 = tpu.matmul %32, %33, %cst_28 {dimension_numbers = #tpu.dot_dimension_numbers<[1], [0], [0], [1], [0, 0, 1, 1], [], []>} : vector<8x128xbf16>, vector<128x128xbf16>, vector<8x128xf32> -> vector<8x128xf32>
    %c0_29 = arith.constant 0 : index
    %c0_30 = arith.constant 0 : index
    %35 = vector.load %arg5[%c0_29, %c0_30] : memref<1x128xf32, #tpu.memory_space<vmem>>, vector<1x128xf32>
    %36 = vector.broadcast %35 : vector<1x128xf32> to vector<8x128xf32>
    %37 = arith.addf %34, %36 : vector<8x128xf32>
    %38 = arith.negf %37 : vector<8x128xf32>
    %39 = math.exp %38 : vector<8x128xf32>
    %cst_31 = arith.constant 1.000000e+00 : f32
    %40 = vector.broadcast %cst_31 : f32 to vector<8x128xf32>
    %41 = arith.addf %40, %39 : vector<8x128xf32>
    %42 = arith.divf %40, %41 : vector<8x128xf32>
    %43 = arith.mulf %37, %42 : vector<8x128xf32>
    %44 = arith.truncf %43 : vector<8x128xf32> to vector<8x128xbf16>
    %c0_32 = arith.constant 0 : index
    %c0_33 = arith.constant 0 : index
    %45 = vector.load %arg6[%c0_32, %c0_33] : memref<128x128xbf16, #tpu.memory_space<vmem>>, vector<128x128xbf16>
    %cst_34 = arith.constant dense<0.000000e+00> : vector<8x128xf32>
    %46 = tpu.matmul %44, %45, %cst_34 {dimension_numbers = #tpu.dot_dimension_numbers<[1], [0], [0], [1], [0, 0, 1, 1], [], []>} : vector<8x128xbf16>, vector<128x128xbf16>, vector<8x128xf32> -> vector<8x128xf32>
    %c0_35 = arith.constant 0 : index
    %c0_36 = arith.constant 0 : index
    %47 = vector.load %arg7[%c0_35, %c0_36] : memref<1x128xf32, #tpu.memory_space<vmem>>, vector<1x128xf32>
    %48 = vector.broadcast %47 : vector<1x128xf32> to vector<8x128xf32>
    %49 = arith.addf %46, %48 : vector<8x128xf32>
    %50 = arith.negf %49 : vector<8x128xf32>
    %51 = math.exp %50 : vector<8x128xf32>
    %cst_37 = arith.constant 1.000000e+00 : f32
    %52 = vector.broadcast %cst_37 : f32 to vector<8x128xf32>
    %53 = arith.addf %52, %51 : vector<8x128xf32>
    %54 = arith.divf %52, %53 : vector<8x128xf32>
    %55 = arith.mulf %49, %54 : vector<8x128xf32>
    %56 = arith.truncf %55 : vector<8x128xf32> to vector<8x128xbf16>
    %c0_38 = arith.constant 0 : index
    %c0_39 = arith.constant 0 : index
    %57 = vector.load %arg8[%c0_38, %c0_39] : memref<128x128xbf16, #tpu.memory_space<vmem>>, vector<128x128xbf16>
    %cst_40 = arith.constant dense<0.000000e+00> : vector<8x128xf32>
    %58 = tpu.matmul %56, %57, %cst_40 {dimension_numbers = #tpu.dot_dimension_numbers<[1], [0], [0], [1], [0, 0, 1, 1], [], []>} : vector<8x128xbf16>, vector<128x128xbf16>, vector<8x128xf32> -> vector<8x128xf32>
    %c0_41 = arith.constant 0 : index
    %c0_42 = arith.constant 0 : index
    %59 = vector.load %arg9[%c0_41, %c0_42] : memref<1x128xf32, #tpu.memory_space<vmem>>, vector<1x128xf32>
    %60 = vector.broadcast %59 : vector<1x128xf32> to vector<8x128xf32>
    %61 = arith.addf %58, %60 : vector<8x128xf32>
    %62 = arith.negf %61 : vector<8x128xf32>
    %63 = math.exp %62 : vector<8x128xf32>
    %cst_43 = arith.constant 1.000000e+00 : f32
    %64 = vector.broadcast %cst_43 : f32 to vector<8x128xf32>
    %65 = arith.addf %64, %63 : vector<8x128xf32>
    %66 = arith.divf %64, %65 : vector<8x128xf32>
    %67 = arith.mulf %61, %66 : vector<8x128xf32>
    %68 = arith.truncf %67 : vector<8x128xf32> to vector<8x128xbf16>
    %c0_44 = arith.constant 0 : index
    %c0_45 = arith.constant 0 : index
    %69 = vector.load %arg10[%c0_44, %c0_45] : memref<128x128xbf16, #tpu.memory_space<vmem>>, vector<128x128xbf16>
    %cst_46 = arith.constant dense<0.000000e+00> : vector<8x128xf32>
    %70 = tpu.matmul %68, %69, %cst_46 {dimension_numbers = #tpu.dot_dimension_numbers<[1], [0], [0], [1], [0, 0, 1, 1], [], []>} : vector<8x128xbf16>, vector<128x128xbf16>, vector<8x128xf32> -> vector<8x128xf32>
    %c0_47 = arith.constant 0 : index
    %c0_48 = arith.constant 0 : index
    %71 = vector.load %arg11[%c0_47, %c0_48] : memref<1x128xf32, #tpu.memory_space<vmem>>, vector<1x128xf32>
    %72 = vector.broadcast %71 : vector<1x128xf32> to vector<8x128xf32>
    %73 = arith.addf %70, %72 : vector<8x128xf32>
    %c0_49 = arith.constant 0 : index
    %c0_50 = arith.constant 0 : index
    %74 = vector.load %arg12[%c0_49, %c0_50] : memref<1x128xf32, #tpu.memory_space<vmem>>, vector<1x128xf32>
    %c0_51 = arith.constant 0 : index
    %c0_52 = arith.constant 0 : index
    %75 = vector.load %arg13[%c0_51, %c0_52] : memref<1x128xf32, #tpu.memory_space<vmem>>, vector<1x128xf32>
    %76 = vector.broadcast %74 : vector<1x128xf32> to vector<8x128xf32>
    %77 = arith.subf %76, %73 : vector<8x128xf32>
    %cst_53 = arith.constant 0.000000e+00 : f32
    %78 = vector.broadcast %cst_53 : f32 to vector<8x128xf32>
    %79 = arith.maximumf %77, %78 : vector<8x128xf32>
    %80 = vector.broadcast %cst_53 : f32 to vector<8x128xf32>
    %81 = arith.subf %77, %80 : vector<8x128xf32>
    %82 = arith.cmpf one, %81, %81 : vector<8x128xf32>
    %83 = vector.broadcast %cst_53 : f32 to vector<8x128xf32>
    %84 = arith.addf %77, %83 : vector<8x128xf32>
    %85 = math.absf %81 : vector<8x128xf32>
    %cst_54 = arith.constant 0.000000e+00 : f32
    %86 = vector.broadcast %cst_54 : f32 to vector<8x128xf32>
    %87 = arith.subf %86, %85 : vector<8x128xf32>
    %88 = math.exp %87 : vector<8x128xf32>
    %89 = math.log1p %88 : vector<8x128xf32>
    %90 = arith.addf %79, %89 : vector<8x128xf32>
    %91 = arith.select %82, %84, %90 : vector<8x128xi1>, vector<8x128xf32>
    %92 = vector.broadcast %74 : vector<1x128xf32> to vector<8x128xf32>
    %93 = arith.subf %92, %91 : vector<8x128xf32>
    %94 = vector.broadcast %75 : vector<1x128xf32> to vector<8x128xf32>
    %95 = arith.subf %93, %94 : vector<8x128xf32>
    %cst_55 = arith.constant 0.000000e+00 : f32
    %96 = vector.broadcast %cst_55 : f32 to vector<8x128xf32>
    %97 = arith.maximumf %95, %96 : vector<8x128xf32>
    %98 = vector.broadcast %cst_55 : f32 to vector<8x128xf32>
    %99 = arith.subf %95, %98 : vector<8x128xf32>
    %100 = arith.cmpf one, %99, %99 : vector<8x128xf32>
    %101 = vector.broadcast %cst_55 : f32 to vector<8x128xf32>
    %102 = arith.addf %95, %101 : vector<8x128xf32>
    %103 = math.absf %99 : vector<8x128xf32>
    %cst_56 = arith.constant 0.000000e+00 : f32
    %104 = vector.broadcast %cst_56 : f32 to vector<8x128xf32>
    %105 = arith.subf %104, %103 : vector<8x128xf32>
    %106 = math.exp %105 : vector<8x128xf32>
    %107 = math.log1p %106 : vector<8x128xf32>
    %108 = arith.addf %97, %107 : vector<8x128xf32>
    %109 = arith.select %100, %102, %108 : vector<8x128xi1>, vector<8x128xf32>
    %110 = vector.broadcast %75 : vector<1x128xf32> to vector<8x128xf32>
    %111 = arith.addf %110, %109 : vector<8x128xf32>
    %112 = math.exp %111 : vector<8x128xf32>
    %113 = tpu.iota {dimensions = array<i32: 1>} : vector<8x128xi32>
    %c24_i32 = arith.constant 24 : i32
    %114 = vector.broadcast %c24_i32 : i32 to vector<8x128xi32>
    %115 = arith.cmpi sge, %113, %114 : vector<8x128xi32>
    %c48_i32 = arith.constant 48 : i32
    %116 = vector.broadcast %c48_i32 : i32 to vector<8x128xi32>
    %117 = arith.cmpi slt, %113, %116 : vector<8x128xi32>
    %118 = arith.andi %115, %117 : vector<8x128xi1>
    %119 = arith.select %118, %112, %73 : vector<8x128xi1>, vector<8x128xf32>
    %c0_57 = arith.constant 0 : index
    %c0_58 = arith.constant 0 : index
    %120 = vector.load %arg14[%c0_57, %c0_58] : memref<8x128xf32, #tpu.memory_space<vmem>>, vector<8x128xf32>
    tpu.vector_store %arg14[%c0_57, %c0_58], %119 {strides = array<i32>} : memref<8x128xf32, #tpu.memory_space<vmem>>, vector<8x128xf32>,
    return
  }
  func.func @transform_0(%arg0: i32) -> (i32, i32, i32) {
    %c0_i32 = arith.constant 0 : i32
    %c0_i32_0 = arith.constant 0 : i32
    %c0_i32_1 = arith.constant 0 : i32
    return %c0_i32, %arg0, %c0_i32_0 : i32, i32, i32
  }
  func.func @transform_1(%arg0: i32) -> (i32, i32, i32) {
    %c0_i32 = arith.constant 0 : i32
    %c0_i32_0 = arith.constant 0 : i32
    %c0_i32_1 = arith.constant 0 : i32
    %c0_i32_2 = arith.constant 0 : i32
    return %c0_i32, %c0_i32_0, %c0_i32_1 : i32, i32, i32
  }
  func.func @transform_2(%arg0: i32) -> (i32, i32) {
    %c0_i32 = arith.constant 0 : i32
    %c0_i32_0 = arith.constant 0 : i32
    %c0_i32_1 = arith.constant 0 : i32
    return %c0_i32, %c0_i32_0 : i32, i32
  }
  func.func @transform_3(%arg0: i32) -> (i32, i32) {
    %c0_i32 = arith.constant 0 : i32
    %c0_i32_0 = arith.constant 0 : i32
    %c0_i32_1 = arith.constant 0 : i32
    return %c0_i32, %c0_i32_0 : i32, i32
  }
  func.func @transform_4(%arg0: i32) -> (i32, i32) {
    %c0_i32 = arith.constant 0 : i32
    %c0_i32_0 = arith.constant 0 : i32
    %c0_i32_1 = arith.constant 0 : i32
    return %c0_i32, %c0_i32_0 : i32, i32
  }
  func.func @transform_5(%arg0: i32) -> (i32, i32) {
    %c0_i32 = arith.constant 0 : i32
    %c0_i32_0 = arith.constant 0 : i32
    %c0_i32_1 = arith.constant 0 : i32
    return %c0_i32, %c0_i32_0 : i32, i32
  }
  func.func @transform_6(%arg0: i32) -> (i32, i32) {
    %c0_i32 = arith.constant 0 : i32
    %c0_i32_0 = arith.constant 0 : i32
    %c0_i32_1 = arith.constant 0 : i32
    return %c0_i32, %c0_i32_0 : i32, i32
  }
  func.func @transform_7(%arg0: i32) -> (i32, i32) {
    %c0_i32 = arith.constant 0 : i32
    %c0_i32_0 = arith.constant 0 : i32
    %c0_i32_1 = arith.constant 0 : i32
    return %c0_i32, %c0_i32_0 : i32, i32
  }
  func.func @transform_8(%arg0: i32) -> (i32, i32) {
    %c0_i32 = arith.constant 0 : i32
    %c0_i32_0 = arith.constant 0 : i32
    %c0_i32_1 = arith.constant 0 : i32
    return %c0_i32, %c0_i32_0 : i32, i32
  }
  func.func @transform_9(%arg0: i32) -> (i32, i32) {
    %c0_i32 = arith.constant 0 : i32
    %c0_i32_0 = arith.constant 0 : i32
    %c0_i32_1 = arith.constant 0 : i32
    return %c0_i32, %c0_i32_0 : i32, i32
  }
  func.func @transform_10(%arg0: i32) -> (i32, i32) {
    %c0_i32 = arith.constant 0 : i32
    %c0_i32_0 = arith.constant 0 : i32
    %c0_i32_1 = arith.constant 0 : i32
    return %c0_i32, %c0_i32_0 : i32, i32
  }
  func.func @transform_11(%arg0: i32) -> (i32, i32) {
    %c0_i32 = arith.constant 0 : i32
    %c0_i32_0 = arith.constant 0 : i32
    %c0_i32_1 = arith.constant 0 : i32
    return %c0_i32, %c0_i32_0 : i32, i32
  }
  func.func @transform_12(%arg0: i32) -> (i32, i32) {
    %c0_i32 = arith.constant 0 : i32
    %c0_i32_0 = arith.constant 0 : i32
    %c0_i32_1 = arith.constant 0 : i32
    return %c0_i32, %c0_i32_0 : i32, i32
  }
  func.func @transform_13(%arg0: i32) -> (i32, i32) {
    %c0_i32 = arith.constant 0 : i32
    %c0_i32_0 = arith.constant 0 : i32
    return %arg0, %c0_i32 : i32, i32
  }
}

</mosaic_0001>

<llo_original>
// kernel: ensemble_model_forward.1
$region0: #{ensemble_model_forward.1}
  #allocation0 [shape = 'u32[]', space=smem, size = 0x4, offset = 0x4, fixed_abs, tag = 'smem constant byte address 0x4 - core index']
  #allocation1 [shape = 'u32[144,128]{1,0:T(1,128)}', space=vmem, size = 0x12000, scoped, tag = 'internal scratch']
  %s0 = inlined_call_operand.vmem [shape: bf16[4,8,8], index: 0, kind: input, shape index: {}]
  %s1 = inlined_call_operand.vmem [shape: bf16[4,8,128], index: 1, kind: input, shape index: {}]
  %s2 = inlined_call_operand.vmem [shape: f32[1,128], index: 2, kind: input, shape index: {}]
  %s3 = inlined_call_operand.vmem [shape: bf16[128,128], index: 3, kind: input, shape index: {}]
  %s4 = inlined_call_operand.vmem [shape: f32[1,128], index: 4, kind: input, shape index: {}]
  %s5 = inlined_call_operand.vmem [shape: bf16[128,128], index: 5, kind: input, shape index: {}]
  %s6 = inlined_call_operand.vmem [shape: f32[1,128], index: 6, kind: input, shape index: {}]
  %s7 = inlined_call_operand.vmem [shape: bf16[128,128], index: 7, kind: input, shape index: {}]
  %s8 = inlined_call_operand.vmem [shape: f32[1,128], index: 8, kind: input, shape index: {}]
  %s9 = inlined_call_operand.vmem [shape: bf16[128,128], index: 9, kind: input, shape index: {}]
  %s10 = inlined_call_operand.vmem [shape: f32[1,128], index: 10, kind: input, shape index: {}]
  %s11 = inlined_call_operand.vmem [shape: f32[1,128], index: 11, kind: input, shape index: {}]
  %s12 = inlined_call_operand.vmem [shape: f32[1,128], index: 12, kind: input, shape index: {}]
  %s13 = inlined_call_operand.vmem [shape: f32[8,128], index: 13, kind: output, shape index: {}]
  %s14 = sld [smem:[#allocation0]]
  $region62: #{ensemble_model_forward.1} parent=0
    _
  %s16 = ssub.s32 1, %s14
  %s17 = scalar_select 0, %s16, %s14
  // Predicated region
  $region2: #{ensemble_model_forward.1} parent=0 // pred_check
    _
  $region3: #{ensemble_model_forward.1} parent=0 // pred_check_branch
    %19 = sbr.rel (0) target = $region5
  $region4: #{ensemble_model_forward.1} parent=0 // pred_region
    _
  $region5: #{ensemble_model_forward.1} parent=0 // pred_fallthru
    _
  // Predicated region
  $region6: #{ensemble_model_forward.1} parent=0 // pred_check
    _
  $region7: #{ensemble_model_forward.1} parent=0 // pred_check_branch
    %21 = sbr.rel (0) target = $region9
  $region8: #{ensemble_model_forward.1} parent=0 // pred_region
    _
  $region9: #{ensemble_model_forward.1} parent=0 // pred_fallthru
    _
  // Predicated region
  $region10: #{ensemble_model_forward.1} parent=0 // pred_check
    _
  $region11: #{ensemble_model_forward.1} parent=0 // pred_check_branch
    %23 = sbr.rel (0) target = $region13
  $region12: #{ensemble_model_forward.1} parent=0 // pred_region
    _
  $region13: #{ensemble_model_forward.1} parent=0 // pred_fallthru
    _
  // Predicated region
  $region14: #{ensemble_model_forward.1} parent=0 // pred_check
    _
  $region15: #{ensemble_model_forward.1} parent=0 // pred_check_branch
    %25 = sbr.rel (0) target = $region17
  $region16: #{ensemble_model_forward.1} parent=0 // pred_region
    _
  $region17: #{ensemble_model_forward.1} parent=0 // pred_fallthru
    _
  // Predicated region
  $region18: #{ensemble_model_forward.1} parent=0 // pred_check
    _
  $region19: #{ensemble_model_forward.1} parent=0 // pred_check_branch
    %27 = sbr.rel (0) target = $region21
  $region20: #{ensemble_model_forward.1} parent=0 // pred_region
    _
  $region21: #{ensemble_model_forward.1} parent=0 // pred_fallthru
    _
  // Predicated region
  $region22: #{ensemble_model_forward.1} parent=0 // pred_check
    _
  $region23: #{ensemble_model_forward.1} parent=0 // pred_check_branch
    %29 = sbr.rel (0) target = $region25
  $region24: #{ensemble_model_forward.1} parent=0 // pred_region
    _
  $region25: #{ensemble_model_forward.1} parent=0 // pred_fallthru
    _
  // Predicated region
  $region26: #{ensemble_model_forward.1} parent=0 // pred_check
    _
  $region27: #{ensemble_model_forward.1} parent=0 // pred_check_branch
    %31 = sbr.rel (0) target = $region29
  $region28: #{ensemble_model_forward.1} parent=0 // pred_region
    _
  $region29: #{ensemble_model_forward.1} parent=0 // pred_fallthru
    _
  // Predicated region
  $region30: #{ensemble_model_forward.1} parent=0 // pred_check
    _
  $region31: #{ensemble_model_forward.1} parent=0 // pred_check_branch
    %33 = sbr.rel (0) target = $region33
  $region32: #{ensemble_model_forward.1} parent=0 // pred_region
    _
  $region33: #{ensemble_model_forward.1} parent=0 // pred_fallthru
    _
  // Predicated region
  $region34: #{ensemble_model_forward.1} parent=0 // pred_check
    _
  $region35: #{ensemble_model_forward.1} parent=0 // pred_check_branch
    %35 = sbr.rel (0) target = $region37
  $region36: #{ensemble_model_forward.1} parent=0 // pred_region
    _
  $region37: #{ensemble_model_forward.1} parent=0 // pred_fallthru
    _
  // Predicated region
  $region38: #{ensemble_model_forward.1} parent=0 // pred_check
    _
  $region39: #{ensemble_model_forward.1} parent=0 // pred_check_branch
    %37 = sbr.rel (0) target = $region41
  $region40: #{ensemble_model_forward.1} parent=0 // pred_region
    _
  $region41: #{ensemble_model_forward.1} parent=0 // pred_fallthru
    _
  // Predicated region
  $region42: #{ensemble_model_forward.1} parent=0 // pred_check
    _
  $region43: #{ensemble_model_forward.1} parent=0 // pred_check_branch
    %39 = sbr.rel (0) target = $region45
  $region44: #{ensemble_model_forward.1} parent=0 // pred_region
    _
  $region45: #{ensemble_model_forward.1} parent=0 // pred_fallthru
    _
  // Predicated region
  $region46: #{ensemble_model_forward.1} parent=0 // pred_check
    _
  $region47: #{ensemble_model_forward.1} parent=0 // pred_check_branch
    %41 = sbr.rel (0) target = $region49
  $region48: #{ensemble_model_forward.1} parent=0 // pred_region
    _
  $region49: #{ensemble_model_forward.1} parent=0 // pred_fallthru
    _
  // Predicated region
  $region50: #{ensemble_model_forward.1} parent=0 // pred_check
    _
  $region51: #{ensemble_model_forward.1} parent=0 // pred_check_branch
    %43 = sbr.rel (0) target = $region53
  $region52: #{ensemble_model_forward.1} parent=0 // pred_region
    _
  $region53: #{ensemble_model_forward.1} parent=0 // pred_fallthru
    _
  %v45 = vld [vmem:[%s0] sm:$0xf]
  %v46 = vld [vmem:[%s1] sm:$0xf]
  %s47 = scalar_lea.vmem %s0, 4
  %v48 = vld [vmem:[%s47] sm:$0xf]
  %s49 = scalar_lea.vmem %s1, 4
  %v50 = vld [vmem:[%s49] sm:$0xf]
  %vm51 = vcmask 64512
  %v53 = vsel %vm51, %v48, 0
  %vm55 = vcmask 1043456
  %v57 = vsel %vm55, %v50, 0
  %59 = vmatprep.subr.bf16.mxu0 0
  %60 = vmatpush1.bf16.msra.mxu0 %v57
  %61 = vmatprep.subr.bf16.mxu0 0
  %62 = vmatpush1.bf16.msra.mxu0 0
  %63 = vmatprep.subr.bf16.mxu0 0
  %64 = vmatpush1.bf16.msra.mxu0 0
  %65 = vmatprep.subr.bf16.mxu0 0
  %66 = vmatpush1.bf16.msra.mxu0 0
  %67 = vmatprep.subr.bf16.mxu0 0
  %68 = vmatpush1.bf16.msra.mxu0 0
  %69 = vmatprep.subr.bf16.mxu0 0
  %70 = vmatpush1.bf16.msra.mxu0 0
  %71 = vmatprep.subr.bf16.mxu0 0
  %72 = vmatpush1.bf16.msra.mxu0 0
  %73 = vmatprep.subr.bf16.mxu0 0
  %74 = vmatpush1.bf16.msra.mxu0 0
  %75 = vmatprep.subr.bf16.mxu0 0
  %76 = vmatpush1.bf16.msra.mxu0 0
  %77 = vmatprep.subr.bf16.mxu0 0
  %78 = vmatpush1.bf16.msra.mxu0 0
  %79 = vmatprep.subr.bf16.mxu0 0
  %80 = vmatpush1.bf16.msra.mxu0 0
  %81 = vmatprep.subr.bf16.mxu0 0
  %82 = vmatpush1.bf16.msra.mxu0 0
  %83 = vmatprep.subr.bf16.mxu0 0
  %84 = vmatpush1.bf16.msra.mxu0 0
  %85 = vmatprep.subr.bf16.mxu0 0
  %86 = vmatpush1.bf16.msra.mxu0 0
  %87 = vmatprep.subr.bf16.mxu0 0
  %88 = vmatpush1.bf16.msra.mxu0 0
  %89 = vmatprep.subr.bf16.mxu0 0
  %90 = vmatpush1.bf16.msra.mxu0 0
  %91 = vmatprep.mubr.bf16.mxu0 0
  %92 = vmatmul.mubr.bf16.gmra.mrb[0].mxu0 %v53
  %v93 = vpop.f32.mrb[0].mxu0
  %v94 = vadd.f32 0.0, %v93
  %v95 = vpop.f32.mrb[0].mxu0
  %v96 = vpop.f32.mrb[0].mxu0
  %v97 = vpop.f32.mrb[0].mxu0
  %98 = vdwg.mxu0
  %v100 = vsel %vm51, %v45, 0
  %v103 = vsel %vm55, %v46, 0
  %105 = vmatprep.subr.bf16.mxu0 0
  %106 = vmatpush1.bf16.msra.mxu0 %v103
  %107 = vmatprep.subr.bf16.mxu0 0
  %108 = vmatpush1.bf16.msra.mxu0 0
  %109 = vmatprep.subr.bf16.mxu0 0
  %110 = vmatpush1.bf16.msra.mxu0 0
  %111 = vmatprep.subr.bf16.mxu0 0
  %112 = vmatpush1.bf16.msra.mxu0 0
  %113 = vmatprep.subr.bf16.mxu0 0
  %114 = vmatpush1.bf16.msra.mxu0 0
  %115 = vmatprep.subr.bf16.mxu0 0
  %116 = vmatpush1.bf16.msra.mxu0 0
  %117 = vmatprep.subr.bf16.mxu0 0
  %118 = vmatpush1.bf16.msra.mxu0 0
  %119 = vmatprep.subr.bf16.mxu0 0
  %120 = vmatpush1.bf16.msra.mxu0 0
  %121 = vmatprep.subr.bf16.mxu0 0
  %122 = vmatpush1.bf16.msra.mxu0 0
  %123 = vmatprep.subr.bf16.mxu0 0
  %124 = vmatpush1.bf16.msra.mxu0 0
  %125 = vmatprep.subr.bf16.mxu0 0
  %126 = vmatpush1.bf16.msra.mxu0 0
  %127 = vmatprep.subr.bf16.mxu0 0
  %128 = vmatpush1.bf16.msra.mxu0 0
  %129 = vmatprep.subr.bf16.mxu0 0
  %130 = vmatpush1.bf16.msra.mxu0 0
  %131 = vmatprep.subr.bf16.mxu0 0
  %132 = vmatpush1.bf16.msra.mxu0 0
  %133 = vmatprep.subr.bf16.mxu0 0
  %134 = vmatpush1.bf16.msra.mxu0 0
  %135 = vmatprep.subr.bf16.mxu0 0
  %136 = vmatpush1.bf16.msra.mxu0 0
  %137 = vmatprep.mubr.bf16.mxu0 0
  %138 = vmatmul.mubr.bf16.gmra.mrb[0].mxu0 %v100
  %v139 = vpop.f32.mrb[0].mxu0
  %v140 = vadd.f32 %v94, %v139
  %v141 = vpop.f32.mrb[0].mxu0
  %v142 = vpop.f32.mrb[0].mxu0
  %v143 = vpop.f32.mrb[0].mxu0
  %144 = vdwg.mxu0
  %s145 = scalar_lea.vmem %s0, 8
  %v146 = vld [vmem:[%s145] sm:$0xf]
  %s147 = scalar_lea.vmem %s1, 8
  %v148 = vld [vmem:[%s147] sm:$0xf]
  %v150 = vsel %vm51, %v146, 0
  %v153 = vsel %vm55, %v148, 0
  %155 = vmatprep.subr.bf16.mxu0 0
  %156 = vmatpush1.bf16.msra.mxu0 %v153
  %157 = vmatprep.subr.bf16.mxu0 0
  %158 = vmatpush1.bf16.msra.mxu0 0
  %159 = vmatprep.subr.bf16.mxu0 0
  %160 = vmatpush1.bf16.msra.mxu0 0
  %161 = vmatprep.subr.bf16.mxu0 0
  %162 = vmatpush1.bf16.msra.mxu0 0
  %163 = vmatprep.subr.bf16.mxu0 0
  %164 = vmatpush1.bf16.msra.mxu0 0
  %165 = vmatprep.subr.bf16.mxu0 0
  %166 = vmatpush1.bf16.msra.mxu0 0
  %167 = vmatprep.subr.bf16.mxu0 0
  %168 = vmatpush1.bf16.msra.mxu0 0
  %169 = vmatprep.subr.bf16.mxu0 0
  %170 = vmatpush1.bf16.msra.mxu0 0
  %171 = vmatprep.subr.bf16.mxu0 0
  %172 = vmatpush1.bf16.msra.mxu0 0
  %173 = vmatprep.subr.bf16.mxu0 0
  %174 = vmatpush1.bf16.msra.mxu0 0
  %175 = vmatprep.subr.bf16.mxu0 0
  %176 = vmatpush1.bf16.msra.mxu0 0
  %177 = vmatprep.subr.bf16.mxu0 0
  %178 = vmatpush1.bf16.msra.mxu0 0
  %179 = vmatprep.subr.bf16.mxu0 0
  %180 = vmatpush1.bf16.msra.mxu0 0
  %181 = vmatprep.subr.bf16.mxu0 0
  %182 = vmatpush1.bf16.msra.mxu0 0
  %183 = vmatprep.subr.bf16.mxu0 0
  %184 = vmatpush1.bf16.msra.mxu0 0
  %185 = vmatprep.subr.bf16.mxu0 0
  %186 = vmatpush1.bf16.msra.mxu0 0
  %187 = vmatprep.mubr.bf16.mxu0 0
  %188 = vmatmul.mubr.bf16.gmra.mrb[0].mxu0 %v150
  %v189 = vpop.f32.mrb[0].mxu0
  %v190 = vadd.f32 0.0, %v189
  %v191 = vpop.f32.mrb[0].mxu0
  %v192 = vpop.f32.mrb[0].mxu0
  %v193 = vpop.f32.mrb[0].mxu0
  %194 = vdwg.mxu0
  %v195 = vadd.f32 %v140, %v190
  %s196 = scalar_lea.vmem %s0, 12
  %v197 = vld [vmem:[%s196] sm:$0xf]
  %s198 = scalar_lea.vmem %s1, 12
  %v199 = vld [vmem:[%s198] sm:$0xf]
  %v201 = vsel %vm51, %v197, 0
  %v204 = vsel %vm55, %v199, 0
  %206 = vmatprep.subr.bf16.mxu0 0
  %207 = vmatpush1.bf16.msra.mxu0 %v204
  %208 = vmatprep.subr.bf16.mxu0 0
  %209 = vmatpush1.bf16.msra.mxu0 0
  %210 = vmatprep.subr.bf16.mxu0 0
  %211 = vmatpush1.bf16.msra.mxu0 0
  %212 = vmatprep.subr.bf16.mxu0 0
  %213 = vmatpush1.bf16.msra.mxu0 0
  %214 = vmatprep.subr.bf16.mxu0 0
  %215 = vmatpush1.bf16.msra.mxu0 0
  %216 = vmatprep.subr.bf16.mxu0 0
  %217 = vmatpush1.bf16.msra.mxu0 0
  %218 = vmatprep.subr.bf16.mxu0 0
  %219 = vmatpush1.bf16.msra.mxu0 0
  %220 = vmatprep.subr.bf16.mxu0 0
  %221 = vmatpush1.bf16.msra.mxu0 0
  %222 = vmatprep.subr.bf16.mxu0 0
  %223 = vmatpush1.bf16.msra.mxu0 0
  %224 = vmatprep.subr.bf16.mxu0 0
  %225 = vmatpush1.bf16.msra.mxu0 0
  %226 = vmatprep.subr.bf16.mxu0 0
  %227 = vmatpush1.bf16.msra.mxu0 0
  %228 = vmatprep.subr.bf16.mxu0 0
  %229 = vmatpush1.bf16.msra.mxu0 0
  %230 = vmatprep.subr.bf16.mxu0 0
  %231 = vmatpush1.bf16.msra.mxu0 0
  %232 = vmatprep.subr.bf16.mxu0 0
  %233 = vmatpush1.bf16.msra.mxu0 0
  %234 = vmatprep.subr.bf16.mxu0 0
  %235 = vmatpush1.bf16.msra.mxu0 0
  %236 = vmatprep.subr.bf16.mxu0 0
  %237 = vmatpush1.bf16.msra.mxu0 0
  %238 = vmatprep.mubr.bf16.mxu0 0
  %239 = vmatmul.mubr.bf16.gmra.mrb[0].mxu0 %v201
  %v240 = vpop.f32.mrb[0].mxu0
  %v241 = vadd.f32 0.0, %v240
  %v242 = vpop.f32.mrb[0].mxu0
  %v243 = vpop.f32.mrb[0].mxu0
  %v244 = vpop.f32.mrb[0].mxu0
  %245 = vdwg.mxu0
  %v246 = vadd.f32 %v195, %v241
  %v247 = vld [vmem:[%s2] sm:$0x1]
  %v249 = vlaneseq
  %v250 = vshrl.u32 %v249, 7
  %v251 = vsub.s32 0, %v250
  %v252 = vrot.slane %v247, %v251
  %v254 = vadd.f32 %v246, %v252
  %v255 = vxor.u32 %v254, 2147483648
  %v256 = vmul.f32 %v255, 1.442695
  %v257 = vpow.pop %v256
  %v258 = vadd.f32 %v257, 1.0
  %v259 = vrcp.pop %v258
  %v260 = vmul.f32 1.0, %v259
  %v261 = vmul.f32 %v254, %v260
  %v262 = vpack.c.bf16 %v261, %v261
  %v263 = vld [vmem:[%s3] sm:$0xf]
  %v264 = vld [vmem:[%s3 + $0x4] sm:$0xf]
  %v265 = vld [vmem:[%s3 + $0x8] sm:$0xf]
  %v266 = vld [vmem:[%s3 + $0xc] sm:$0xf]
  %v267 = vld [vmem:[%s3 + $0x10] sm:$0xf]
  %v268 = vld [vmem:[%s3 + $0x14] sm:$0xf]
  %v269 = vld [vmem:[%s3 + $0x18] sm:$0xf]
  %v270 = vld [vmem:[%s3 + $0x1c] sm:$0xf]
  %v271 = vld [vmem:[%s3 + $0x20] sm:$0xf]
  %v272 = vld [vmem:[%s3 + $0x24] sm:$0xf]
  %v273 = vld [vmem:[%s3 + $0x28] sm:$0xf]
  %v274 = vld [vmem:[%s3 + $0x2c] sm:$0xf]
  %v275 = vld [vmem:[%s3 + $0x30] sm:$0xf]
  %v276 = vld [vmem:[%s3 + $0x34] sm:$0xf]
  %v277 = vld [vmem:[%s3 + $0x38] sm:$0xf]
  %v278 = vld [vmem:[%s3 + $0x3c] sm:$0xf]
  %v279 = vld [vmem:[%s4] sm:$0x1]
  %v281 = vlaneseq
  %v282 = vshrl.u32 %v281, 7
  %v283 = vsub.s32 0, %v282
  %v284 = vrot.slane %v279, %v283
  %v302 = vunpack.c.l.b16 %v263
  %v303 = vunpack.c.l.b16 %v264
  %v304 = vunpack.c.l.b16 %v265
  %v305 = vunpack.c.l.b16 %v266
  %v306 = vunpack.c.l.b16 %v267
  %v307 = vunpack.c.l.b16 %v268
  %v308 = vunpack.c.l.b16 %v269
  %v309 = vunpack.c.l.b16 %v270
  %v310 = vunpack.c.l.b16 %v271
  %v311 = vunpack.c.l.b16 %v272
  %v312 = vunpack.c.l.b16 %v273
  %v313 = vunpack.c.l.b16 %v274
  %v314 = vunpack.c.l.b16 %v275
  %v315 = vunpack.c.l.b16 %v276
  %v316 = vunpack.c.l.b16 %v277
  %v317 = vunpack.c.l.b16 %v278
  %v318 = vpack.c.b16 %v303, %v302
  %v319 = vpack.c.b16 %v305, %v304
  %v320 = vpack.c.b16 %v307, %v306
  %v321 = vpack.c.b16 %v309, %v308
  %v322 = vpack.c.b16 %v311, %v310
  %v323 = vpack.c.b16 %v313, %v312
  %v324 = vpack.c.b16 %v315, %v314
  %v325 = vpack.c.b16 %v317, %v316
  %334 = vmatprep.subr.bf16.mxu0 0
  %335 = vmatpush1.bf16.msra.mxu0 %v318
  %336 = vmatprep.subr.bf16.mxu0 0
  %337 = vmatpush1.bf16.msra.mxu0 %v319
  %338 = vmatprep.subr.bf16.mxu0 0
  %339 = vmatpush1.bf16.msra.mxu0 %v320
  %340 = vmatprep.subr.bf16.mxu0 0
  %341 = vmatpush1.bf16.msra.mxu0 %v321
  %342 = vmatprep.subr.bf16.mxu0 0
  %343 = vmatpush1.bf16.msra.mxu0 %v322
  %344 = vmatprep.subr.bf16.mxu0 0
  %345 = vmatpush1.bf16.msra.mxu0 %v323
  %346 = vmatprep.subr.bf16.mxu0 0
  %347 = vmatpush1.bf16.msra.mxu0 %v324
  %348 = vmatprep.subr.bf16.mxu0 0
  %349 = vmatpush1.bf16.msra.mxu0 %v325
  %350 = vmatprep.subr.bf16.mxu0 0
  %351 = vmatpush1.bf16.msra.mxu0 0
  %352 = vmatprep.subr.bf16.mxu0 0
  %353 = vmatpush1.bf16.msra.mxu0 0
  %354 = vmatprep.subr.bf16.mxu0 0
  %355 = vmatpush1.bf16.msra.mxu0 0
  %356 = vmatprep.subr.bf16.mxu0 0
  %357 = vmatpush1.bf16.msra.mxu0 0
  %358 = vmatprep.subr.bf16.mxu0 0
  %359 = vmatpush1.bf16.msra.mxu0 0
  %360 = vmatprep.subr.bf16.mxu0 0
  %361 = vmatpush1.bf16.msra.mxu0 0
  %362 = vmatprep.subr.bf16.mxu0 0
  %363 = vmatpush1.bf16.msra.mxu0 0
  %364 = vmatprep.subr.bf16.mxu0 0
  %365 = vmatpush1.bf16.msra.mxu0 0
  %366 = vmatprep.mubr.bf16.mxu0 0
  %367 = vmatmul.mubr.bf16.gmra.mrb[0].mxu0 %v262
  %v368 = vpop.f32.mrb[0].mxu0
  %v369 = vadd.f32 %v284, %v368
  %v370 = vpop.f32.mrb[0].mxu0
  %v371 = vpop.f32.mrb[0].mxu0
  %v372 = vpop.f32.mrb[0].mxu0
  %373 = vdwg.mxu0
  %v374 = vxor.u32 %v369, 2147483648
  %v375 = vmul.f32 %v374, 1.442695
  %v376 = vpow.pop %v375
  %v377 = vadd.f32 %v376, 1.0
  %v378 = vrcp.pop %v377
  %v379 = vmul.f32 1.0, %v378
  %v380 = vmul.f32 %v369, %v379
  %v381 = vpack.c.bf16 %v380, %v380
  %v382 = vld [vmem:[%s5] sm:$0xf]
  %v383 = vld [vmem:[%s5 + $0x4] sm:$0xf]
  %v384 = vld [vmem:[%s5 + $0x8] sm:$0xf]
  %v385 = vld [vmem:[%s5 + $0xc] sm:$0xf]
  %v386 = vld [vmem:[%s5 + $0x10] sm:$0xf]
  %v387 = vld [vmem:[%s5 + $0x14] sm:$0xf]
  %v388 = vld [vmem:[%s5 + $0x18] sm:$0xf]
  %v389 = vld [vmem:[%s5 + $0x1c] sm:$0xf]
  %v390 = vld [vmem:[%s5 + $0x20] sm:$0xf]
  %v391 = vld [vmem:[%s5 + $0x24] sm:$0xf]
  %v392 = vld [vmem:[%s5 + $0x28] sm:$0xf]
  %v393 = vld [vmem:[%s5 + $0x2c] sm:$0xf]
  %v394 = vld [vmem:[%s5 + $0x30] sm:$0xf]
  %v395 = vld [vmem:[%s5 + $0x34] sm:$0xf]
  %v396 = vld [vmem:[%s5 + $0x38] sm:$0xf]
  %v397 = vld [vmem:[%s5 + $0x3c] sm:$0xf]
  %v398 = vld [vmem:[%s6] sm:$0x1]
  %v400 = vlaneseq
  %v401 = vshrl.u32 %v400, 7
  %v402 = vsub.s32 0, %v401
  %v403 = vrot.slane %v398, %v402
  %v421 = vunpack.c.l.b16 %v382
  %v422 = vunpack.c.l.b16 %v383
  %v423 = vunpack.c.l.b16 %v384
  %v424 = vunpack.c.l.b16 %v385
  %v425 = vunpack.c.l.b16 %v386
  %v426 = vunpack.c.l.b16 %v387
  %v427 = vunpack.c.l.b16 %v388
  %v428 = vunpack.c.l.b16 %v389
  %v429 = vunpack.c.l.b16 %v390
  %v430 = vunpack.c.l.b16 %v391
  %v431 = vunpack.c.l.b16 %v392
  %v432 = vunpack.c.l.b16 %v393
  %v433 = vunpack.c.l.b16 %v394
  %v434 = vunpack.c.l.b16 %v395
  %v435 = vunpack.c.l.b16 %v396
  %v436 = vunpack.c.l.b16 %v397
  %v437 = vpack.c.b16 %v422, %v421
  %v438 = vpack.c.b16 %v424, %v423
  %v439 = vpack.c.b16 %v426, %v425
  %v440 = vpack.c.b16 %v428, %v427
  %v441 = vpack.c.b16 %v430, %v429
  %v442 = vpack.c.b16 %v432, %v431
  %v443 = vpack.c.b16 %v434, %v433
  %v444 = vpack.c.b16 %v436, %v435
  %453 = vmatprep.subr.bf16.mxu0 0
  %454 = vmatpush1.bf16.msra.mxu0 %v437
  %455 = vmatprep.subr.bf16.mxu0 0
  %456 = vmatpush1.bf16.msra.mxu0 %v438
  %457 = vmatprep.subr.bf16.mxu0 0
  %458 = vmatpush1.bf16.msra.mxu0 %v439
  %459 = vmatprep.subr.bf16.mxu0 0
  %460 = vmatpush1.bf16.msra.mxu0 %v440
  %461 = vmatprep.subr.bf16.mxu0 0
  %462 = vmatpush1.bf16.msra.mxu0 %v441
  %463 = vmatprep.subr.bf16.mxu0 0
  %464 = vmatpush1.bf16.msra.mxu0 %v442
  %465 = vmatprep.subr.bf16.mxu0 0
  %466 = vmatpush1.bf16.msra.mxu0 %v443
  %467 = vmatprep.subr.bf16.mxu0 0
  %468 = vmatpush1.bf16.msra.mxu0 %v444
  %469 = vmatprep.subr.bf16.mxu0 0
  %470 = vmatpush1.bf16.msra.mxu0 0
  %471 = vmatprep.subr.bf16.mxu0 0
  %472 = vmatpush1.bf16.msra.mxu0 0
  %473 = vmatprep.subr.bf16.mxu0 0
  %474 = vmatpush1.bf16.msra.mxu0 0
  %475 = vmatprep.subr.bf16.mxu0 0
  %476 = vmatpush1.bf16.msra.mxu0 0
  %477 = vmatprep.subr.bf16.mxu0 0
  %478 = vmatpush1.bf16.msra.mxu0 0
  %479 = vmatprep.subr.bf16.mxu0 0
  %480 = vmatpush1.bf16.msra.mxu0 0
  %481 = vmatprep.subr.bf16.mxu0 0
  %482 = vmatpush1.bf16.msra.mxu0 0
  %483 = vmatprep.subr.bf16.mxu0 0
  %484 = vmatpush1.bf16.msra.mxu0 0
  %485 = vmatprep.mubr.bf16.mxu0 0
  %486 = vmatmul.mubr.bf16.gmra.mrb[0].mxu0 %v381
  %v487 = vpop.f32.mrb[0].mxu0
  %v488 = vadd.f32 %v403, %v487
  %v489 = vpop.f32.mrb[0].mxu0
  %v490 = vpop.f32.mrb[0].mxu0
  %v491 = vpop.f32.mrb[0].mxu0
  %492 = vdwg.mxu0
  %v493 = vxor.u32 %v488, 2147483648
  %v494 = vmul.f32 %v493, 1.442695
  %v495 = vpow.pop %v494
  %v496 = vadd.f32 %v495, 1.0
  %v497 = vrcp.pop %v496
  %v498 = vmul.f32 1.0, %v497
  %v499 = vmul.f32 %v488, %v498
  %v500 = vpack.c.bf16 %v499, %v499
  %v501 = vld [vmem:[%s7] sm:$0xf]
  %v502 = vld [vmem:[%s7 + $0x4] sm:$0xf]
  %v503 = vld [vmem:[%s7 + $0x8] sm:$0xf]
  %v504 = vld [vmem:[%s7 + $0xc] sm:$0xf]
  %v505 = vld [vmem:[%s7 + $0x10] sm:$0xf]
  %v506 = vld [vmem:[%s7 + $0x14] sm:$0xf]
  %v507 = vld [vmem:[%s7 + $0x18] sm:$0xf]
  %v508 = vld [vmem:[%s7 + $0x1c] sm:$0xf]
  %v509 = vld [vmem:[%s7 + $0x20] sm:$0xf]
  %v510 = vld [vmem:[%s7 + $0x24] sm:$0xf]
  %v511 = vld [vmem:[%s7 + $0x28] sm:$0xf]
  %v512 = vld [vmem:[%s7 + $0x2c] sm:$0xf]
  %v513 = vld [vmem:[%s7 + $0x30] sm:$0xf]
  %v514 = vld [vmem:[%s7 + $0x34] sm:$0xf]
  %v515 = vld [vmem:[%s7 + $0x38] sm:$0xf]
  %v516 = vld [vmem:[%s7 + $0x3c] sm:$0xf]
  %v517 = vld [vmem:[%s8] sm:$0x1]
  %v519 = vlaneseq
  %v520 = vshrl.u32 %v519, 7
  %v521 = vsub.s32 0, %v520
  %v522 = vrot.slane %v517, %v521
  %v540 = vunpack.c.l.b16 %v501
  %v541 = vunpack.c.l.b16 %v502
  %v542 = vunpack.c.l.b16 %v503
  %v543 = vunpack.c.l.b16 %v504
  %v544 = vunpack.c.l.b16 %v505
  %v545 = vunpack.c.l.b16 %v506
  %v546 = vunpack.c.l.b16 %v507
  %v547 = vunpack.c.l.b16 %v508
  %v548 = vunpack.c.l.b16 %v509
  %v549 = vunpack.c.l.b16 %v510
  %v550 = vunpack.c.l.b16 %v511
  %v551 = vunpack.c.l.b16 %v512
  %v552 = vunpack.c.l.b16 %v513
  %v553 = vunpack.c.l.b16 %v514
  %v554 = vunpack.c.l.b16 %v515
  %v555 = vunpack.c.l.b16 %v516
  %v556 = vpack.c.b16 %v541, %v540
  %v557 = vpack.c.b16 %v543, %v542
  %v558 = vpack.c.b16 %v545, %v544
  %v559 = vpack.c.b16 %v547, %v546
  %v560 = vpack.c.b16 %v549, %v548
  %v561 = vpack.c.b16 %v551, %v550
  %v562 = vpack.c.b16 %v553, %v552
  %v563 = vpack.c.b16 %v555, %v554
  %572 = vmatprep.subr.bf16.mxu0 0
  %573 = vmatpush1.bf16.msra.mxu0 %v556
  %574 = vmatprep.subr.bf16.mxu0 0
  %575 = vmatpush1.bf16.msra.mxu0 %v557
  %576 = vmatprep.subr.bf16.mxu0 0
  %577 = vmatpush1.bf16.msra.mxu0 %v558
  %578 = vmatprep.subr.bf16.mxu0 0
  %579 = vmatpush1.bf16.msra.mxu0 %v559
  %580 = vmatprep.subr.bf16.mxu0 0
  %581 = vmatpush1.bf16.msra.mxu0 %v560
  %582 = vmatprep.subr.bf16.mxu0 0
  %583 = vmatpush1.bf16.msra.mxu0 %v561
  %584 = vmatprep.subr.bf16.mxu0 0
  %585 = vmatpush1.bf16.msra.mxu0 %v562
  %586 = vmatprep.subr.bf16.mxu0 0
  %587 = vmatpush1.bf16.msra.mxu0 %v563
  %588 = vmatprep.subr.bf16.mxu0 0
  %589 = vmatpush1.bf16.msra.mxu0 0
  %590 = vmatprep.subr.bf16.mxu0 0
  %591 = vmatpush1.bf16.msra.mxu0 0
  %592 = vmatprep.subr.bf16.mxu0 0
  %593 = vmatpush1.bf16.msra.mxu0 0
  %594 = vmatprep.subr.bf16.mxu0 0
  %595 = vmatpush1.bf16.msra.mxu0 0
  %596 = vmatprep.subr.bf16.mxu0 0
  %597 = vmatpush1.bf16.msra.mxu0 0
  %598 = vmatprep.subr.bf16.mxu0 0
  %599 = vmatpush1.bf16.msra.mxu0 0
  %600 = vmatprep.subr.bf16.mxu0 0
  %601 = vmatpush1.bf16.msra.mxu0 0
  %602 = vmatprep.subr.bf16.mxu0 0
  %603 = vmatpush1.bf16.msra.mxu0 0
  %604 = vmatprep.mubr.bf16.mxu0 0
  %605 = vmatmul.mubr.bf16.gmra.mrb[0].mxu0 %v500
  %v606 = vpop.f32.mrb[0].mxu0
  %v607 = vadd.f32 %v522, %v606
  %v608 = vpop.f32.mrb[0].mxu0
  %v609 = vpop.f32.mrb[0].mxu0
  %v610 = vpop.f32.mrb[0].mxu0
  %611 = vdwg.mxu0
  %v612 = vxor.u32 %v607, 2147483648
  %v613 = vmul.f32 %v612, 1.442695
  %v614 = vpow.pop %v613
  %v615 = vadd.f32 %v614, 1.0
  %v616 = vrcp.pop %v615
  %v617 = vmul.f32 1.0, %v616
  %v618 = vmul.f32 %v607, %v617
  %v619 = vpack.c.bf16 %v618, %v618
  %v620 = vld [vmem:[%s9] sm:$0xf]
  %v621 = vld [vmem:[%s9 + $0x4] sm:$0xf]
  %v622 = vld [vmem:[%s9 + $0x8] sm:$0xf]
  %v623 = vld [vmem:[%s9 + $0xc] sm:$0xf]
  %v624 = vld [vmem:[%s9 + $0x10] sm:$0xf]
  %v625 = vld [vmem:[%s9 + $0x14] sm:$0xf]
  %v626 = vld [vmem:[%s9 + $0x18] sm:$0xf]
  %v627 = vld [vmem:[%s9 + $0x1c] sm:$0xf]
  %v628 = vld [vmem:[%s9 + $0x20] sm:$0xf]
  %v629 = vld [vmem:[%s9 + $0x24] sm:$0xf]
  %v630 = vld [vmem:[%s9 + $0x28] sm:$0xf]
  %v631 = vld [vmem:[%s9 + $0x2c] sm:$0xf]
  %v632 = vld [vmem:[%s9 + $0x30] sm:$0xf]
  %v633 = vld [vmem:[%s9 + $0x34] sm:$0xf]
  %v634 = vld [vmem:[%s9 + $0x38] sm:$0xf]
  %v635 = vld [vmem:[%s9 + $0x3c] sm:$0xf]
  %v636 = vld [vmem:[%s10] sm:$0x1]
  %v638 = vlaneseq
  %v639 = vshrl.u32 %v638, 7
  %v640 = vsub.s32 0, %v639
  %v641 = vrot.slane %v636, %v640
  %v659 = vunpack.c.l.b16 %v620
  %v660 = vunpack.c.l.b16 %v621
  %v661 = vunpack.c.l.b16 %v622
  %v662 = vunpack.c.l.b16 %v623
  %v663 = vunpack.c.l.b16 %v624
  %v664 = vunpack.c.l.b16 %v625
  %v665 = vunpack.c.l.b16 %v626
  %v666 = vunpack.c.l.b16 %v627
  %v667 = vunpack.c.l.b16 %v628
  %v668 = vunpack.c.l.b16 %v629
  %v669 = vunpack.c.l.b16 %v630
  %v670 = vunpack.c.l.b16 %v631
  %v671 = vunpack.c.l.b16 %v632
  %v672 = vunpack.c.l.b16 %v633
  %v673 = vunpack.c.l.b16 %v634
  %v674 = vunpack.c.l.b16 %v635
  %v675 = vpack.c.b16 %v660, %v659
  %v676 = vpack.c.b16 %v662, %v661
  %v677 = vpack.c.b16 %v664, %v663
  %v678 = vpack.c.b16 %v666, %v665
  %v679 = vpack.c.b16 %v668, %v667
  %v680 = vpack.c.b16 %v670, %v669
  %v681 = vpack.c.b16 %v672, %v671
  %v682 = vpack.c.b16 %v674, %v673
  %691 = vmatprep.subr.bf16.mxu0 0
  %692 = vmatpush1.bf16.msra.mxu0 %v675
  %693 = vmatprep.subr.bf16.mxu0 0
  %694 = vmatpush1.bf16.msra.mxu0 %v676
  %695 = vmatprep.subr.bf16.mxu0 0
  %696 = vmatpush1.bf16.msra.mxu0 %v677
  %697 = vmatprep.subr.bf16.mxu0 0
  %698 = vmatpush1.bf16.msra.mxu0 %v678
  %699 = vmatprep.subr.bf16.mxu0 0
  %700 = vmatpush1.bf16.msra.mxu0 %v679
  %701 = vmatprep.subr.bf16.mxu0 0
  %702 = vmatpush1.bf16.msra.mxu0 %v680
  %703 = vmatprep.subr.bf16.mxu0 0
  %704 = vmatpush1.bf16.msra.mxu0 %v681
  %705 = vmatprep.subr.bf16.mxu0 0
  %706 = vmatpush1.bf16.msra.mxu0 %v682
  %707 = vmatprep.subr.bf16.mxu0 0
  %708 = vmatpush1.bf16.msra.mxu0 0
  %709 = vmatprep.subr.bf16.mxu0 0
  %710 = vmatpush1.bf16.msra.mxu0 0
  %711 = vmatprep.subr.bf16.mxu0 0
  %712 = vmatpush1.bf16.msra.mxu0 0
  %713 = vmatprep.subr.bf16.mxu0 0
  %714 = vmatpush1.bf16.msra.mxu0 0
  %715 = vmatprep.subr.bf16.mxu0 0
  %716 = vmatpush1.bf16.msra.mxu0 0
  %717 = vmatprep.subr.bf16.mxu0 0
  %718 = vmatpush1.bf16.msra.mxu0 0
  %719 = vmatprep.subr.bf16.mxu0 0
  %720 = vmatpush1.bf16.msra.mxu0 0
  %721 = vmatprep.subr.bf16.mxu0 0
  %722 = vmatpush1.bf16.msra.mxu0 0
  %723 = vmatprep.mubr.bf16.mxu0 0
  %724 = vmatmul.mubr.bf16.gmra.mrb[0].mxu0 %v619
  %v725 = vpop.f32.mrb[0].mxu0
  %v726 = vadd.f32 %v641, %v725
  %v727 = vpop.f32.mrb[0].mxu0
  %v728 = vpop.f32.mrb[0].mxu0
  %v729 = vpop.f32.mrb[0].mxu0
  %730 = vdwg.mxu0
  %v731 = vld [vmem:[%s11] sm:$0x1]
  %v732 = vld [vmem:[%s12] sm:$0x1]
  %v734 = vlaneseq
  %v735 = vshrl.u32 %v734, 7
  %v736 = vsub.s32 0, %v735
  %v737 = vrot.slane %v731, %v736
  %v739 = vsub.f32 %v737, %v726
  %v740 = vmax.f32 %v739, 0.0
  %vm741 = vcmp.ne.f32.partialorder %v739, %v739
  %v742 = vadd.f32 %v739, 0.0
  %v743 = vand.u32 2147483647, %v739
  %v744 = vsub.f32 0.0, %v743
  %v745 = vmul.f32 %v744, 1.442695
  %v746 = vpow.pop %v745
  %v747 = vadd.f32 %v746, 1.0
  %v748 = vlog2.pop %v747
  %v749 = vmul.f32 %v748, 0.6931472
  %v750 = vmul.f32 -0.5, %v746
  %v751 = vadd.f32 %v750, 1.0
  %v752 = vmul.f32 %v751, %v746
  %v753 = vand.u32 2147483647, %v746
  %vm754 = vcmp.lt.f32.partialorder %v753, 0.0004427343
  %v755 = vsel %vm754, %v752, %v749
  %v756 = vadd.f32 %v740, %v755
  %v757 = vsel %vm741, %v742, %v756
  %v758 = vsub.f32 %v737, %v757
  %v760 = vlaneseq
  %v761 = vshrl.u32 %v760, 7
  %v762 = vsub.s32 0, %v761
  %v763 = vrot.slane %v732, %v762
  %v765 = vsub.f32 %v758, %v763
  %v766 = vmax.f32 %v765, 0.0
  %vm767 = vcmp.ne.f32.partialorder %v765, %v765
  %v768 = vadd.f32 %v765, 0.0
  %v769 = vand.u32 2147483647, %v765
  %v770 = vsub.f32 0.0, %v769
  %v771 = vmul.f32 %v770, 1.442695
  %v772 = vpow.pop %v771
  %v773 = vadd.f32 %v772, 1.0
  %v774 = vlog2.pop %v773
  %v775 = vmul.f32 %v774, 0.6931472
  %v776 = vmul.f32 -0.5, %v772
  %v777 = vadd.f32 %v776, 1.0
  %v778 = vmul.f32 %v777, %v772
  %v779 = vand.u32 2147483647, %v772
  %vm780 = vcmp.lt.f32.partialorder %v779, 0.0004427343
  %v781 = vsel %vm780, %v778, %v775
  %v782 = vadd.f32 %v766, %v781
  %v783 = vsel %vm767, %v768, %v782
  %v784 = vadd.f32 %v763, %v783
  %v785 = vmul.f32 %v784, 1.442695
  %v786 = vpow.pop %v785
  %v787 = vlaneseq
  %v788 = vand.u32 %v787, 127
  %vm789 = vcmp.ge.s32.totalorder %v788, 24
  %vm790 = vcmp.lt.s32.totalorder %v788, 48
  %vm791 = vmand %vm789, %vm790
  %v792 = vsel %vm791, %v786, %v726
  %793 = vst [vmem:[%s13] sm:$0xff] %v792
  // Predicated region
  $region54: #{ensemble_model_forward.1} parent=0 // pred_check
    _
  $region55: #{ensemble_model_forward.1} parent=0 // pred_check_branch
    %795 = sbr.rel (0) target = $region57
  $region56: #{ensemble_model_forward.1} parent=0 // pred_region
    _
  $region57: #{ensemble_model_forward.1} parent=0 // pred_fallthru
    _
  // Predicated region
  $region58: #{ensemble_model_forward.1} parent=0 // pred_check
    _
  $region59: #{ensemble_model_forward.1} parent=0 // pred_check_branch
    %797 = sbr.rel (0) target = $region61
  $region60: #{ensemble_model_forward.1} parent=0 // pred_region
    _
  $region61: #{ensemble_model_forward.1} parent=0 // pred_fallthru
    _

</llo_original>
